<compile_context>
chip_gen: v7x
topology: tpu7x:2x2x1
jax: 0.10.0
libtpu: 0.0.40
codegen_flags: <defaults>
</compile_context>

<pallas_src>
import functools

import jax
import jax.numpy as jnp
from jax.experimental import pallas as pl
from jax.experimental.pallas import tpu as pltpu

_LANE = 128


# ---------------------------------------------------------------------------
# Generation-aware configuration.
# ---------------------------------------------------------------------------
@functools.lru_cache(maxsize=None)
def _tpu_config():
    kind = ""
    try:
        kind = jax.devices()[0].device_kind.lower()
    except Exception:
        pass

    if "v7" in kind:
        small_vmem = True                      # 64 MiB per TensorCore
    elif any(t in kind for t in ("v2", "v3", "v4", "v5", "v6")):
        small_vmem = False                     # 128 MiB VMEM
    else:
        vb = None
        try:
            vb = getattr(pltpu.get_tpu_info(), "vmem_capacity_bytes", None)
        except Exception:
            vb = None
        small_vmem = (vb is None) or (int(vb) < (96 << 20))

    multi_tc = any(t in kind for t in ("v7", "v5p", "v4"))
    bf16_vpu = ("v6" in kind) or ("v7" in kind)

    if small_vmem:
        data_budget = 28 << 20                 # x in+out, double-buffered
        vmem_limit = 48 << 20
    else:
        data_budget = 96 << 20
        vmem_limit = 112 << 20

    return dict(kind=kind, multi_tc=multi_tc, bf16_vpu=bf16_vpu,
                data_budget=data_budget, vmem_limit=vmem_limit)


def _round_up(v, m):
    return ((v + m - 1) // m) * m


def _pick_hw_tile(hw, c, itemsize, requested=None, target_bytes=1 << 20):
    if requested is not None:
        t = max(_LANE, _round_up(int(requested), _LANE))
    else:
        t = max(_LANE, (int(target_bytes) // max(1, c * itemsize) // _LANE) * _LANE)
    return min(t, _round_up(hw, _LANE))


# ---------------------------------------------------------------------------
# Shared MLP (two 1x1 convs, no bias) + sigmoid over stacked {avg, max} pools.
# ---------------------------------------------------------------------------
def _shared_mlp_sigmoid(avg, mx, w1t, w2t):
    # avg, mx: (B, C) f32;  w1t: (C, hidden) f32;  w2t: (hidden, C) f32.
    b = avg.shape[0]
    pooled = jnp.concatenate([avg, mx], axis=0)                    # (2B, C)
    h = jnp.dot(pooled, w1t, preferred_element_type=jnp.float32)   # (2B, hid)
    h = jnp.maximum(h, 0.0)                                        # ReLU
    logits = jnp.dot(h, w2t, preferred_element_type=jnp.float32)   # (2B, C)
    return jax.nn.sigmoid(logits[:b] + logits[b:])                 # (B, C)


# ---------------------------------------------------------------------------
# Path A: fused single-kernel, batch-blocked (whole H*W resident in VMEM).
# ---------------------------------------------------------------------------
def _ca_fused_kernel(x_ref, w1t_ref, w2t_ref, o_ref, *, apply_f32):
    nb, c, hw = x_ref.shape
    chunked = (hw % _LANE == 0) and (hw > _LANE)
    n_lane = hw // _LANE if chunked else 1
    unroll = min(8, n_lane)
    # Lane-wide VPU accumulators when they fit comfortably in the vreg file,
    # otherwise reduce each 128-lane slice immediately to stay small.
    lane_acc = (2 * nb * c * _LANE * 4) <= (128 * 1024)

    # ---- Pass 1: global average + max pool over the flattened spatial axis.
    if not chunked:
        xc = x_ref[...].astype(jnp.float32)
        s_vec = jnp.sum(xc, axis=-1)                               # (nb, C)
        m_vec = jnp.max(xc, axis=-1)                               # (nb, C)
    elif lane_acc:
        def pool_body(k, carry):
            s, m = carry
            start = pl.multiple_of(k * _LANE, _LANE)
            xc = x_ref[:, :, pl.ds(start, _LANE)].astype(jnp.float32)
            return s + xc, jnp.maximum(m, xc)                      # pure VPU

        s_acc, m_acc = jax.lax.fori_loop(
            0, n_lane, pool_body,
            (jnp.zeros((nb, c, _LANE), jnp.float32),
             jnp.full((nb, c, _LANE), -jnp.inf, jnp.float32)),
            unroll=unroll)
        s_vec = jnp.sum(s_acc, axis=-1)                            # one XLU reduce
        m_vec = jnp.max(m_acc, axis=-1)
    else:
        def pool_body(k, carry):
            s, m = carry
            start = pl.multiple_of(k * _LANE, _LANE)
            xc = x_ref[:, :, pl.ds(start, _LANE)].astype(jnp.float32)
            return (s + jnp.sum(xc, axis=-1),
                    jnp.maximum(m, jnp.max(xc, axis=-1)))

        s_vec, m_vec = jax.lax.fori_loop(
            0, n_lane, pool_body,
            (jnp.zeros((nb, c), jnp.float32),
             jnp.full((nb, c), -jnp.inf, jnp.float32)),
            unroll=unroll)

    avg = s_vec * (1.0 / hw)

    # ---- Shared MLP fused over {avg, max} and over the batch block.
    att = _shared_mlp_sigmoid(avg, m_vec, w1t_ref[...], w2t_ref[...])  # (nb, C)
    att3 = att[:, :, None]                                             # (nb, C, 1)
    if not apply_f32:
        att3 = att3.astype(o_ref.dtype)

    # ---- Pass 2: out = att * x, re-read from VMEM, lane-dense stores.
    if not chunked:
        xc = x_ref[...]
        if apply_f32:
            xc = xc.astype(jnp.float32)
        o_ref[...] = (att3 * xc).astype(o_ref.dtype)
    else:
        def apply_body(k, _):
            start = pl.multiple_of(k * _LANE, _LANE)
            xc = x_ref[:, :, pl.ds(start, _LANE)]
            if apply_f32:
                xc = xc.astype(jnp.float32)
            o_ref[:, :, pl.ds(start, _LANE)] = (att3 * xc).astype(o_ref.dtype)
            return 0

        jax.lax.fori_loop(0, n_lane, apply_body, 0, unroll=unroll)


def _channel_attention_batched(x_flat, w1t, w2t, *, hidden, apply_f32, cfg,
                               itemsize, per_batch_bytes):
    N, C, HW = x_flat.shape
    max_nb = max(1, int(cfg["data_budget"] // per_batch_bytes))
    if cfg["multi_tc"] and N >= 2:
        cap = max(1, min(max_nb, N // 2))     # keep >= 2 steps for 2 TensorCores
    else:
        cap = max(1, min(max_nb, N))          # single TC: grid is a serial loop
    nb = max(d for d in range(1, N + 1) if N % d == 0 and d <= cap)

    flops = int(8 * N * C * hidden + 4 * N * C * HW)
    bytes_accessed = int(2 * N * C * HW * itemsize + 2 * C * hidden * 4)

    return pl.pallas_call(
        functools.partial(_ca_fused_kernel, apply_f32=apply_f32),
        out_shape=jax.ShapeDtypeStruct((N, C, HW), x_flat.dtype),
        grid_spec=pltpu.PrefetchScalarGridSpec(
            num_scalar_prefetch=0,
            grid=(N // nb,),
            in_specs=[
                pl.BlockSpec((nb, C, HW), lambda b: (b, 0, 0)),
                pl.BlockSpec((C, hidden), lambda b: (0, 0)),   # revisited
                pl.BlockSpec((hidden, C), lambda b: (0, 0)),   # revisited
            ],
            out_specs=pl.BlockSpec((nb, C, HW), lambda b: (b, 0, 0)),
        ),
        compiler_params=pltpu.CompilerParams(
            dimension_semantics=("parallel",),
            vmem_limit_bytes=cfg["vmem_limit"]),
        cost_estimate=pl.CostEstimate(
            flops=flops, transcendentals=int(N * C),
            bytes_accessed=bytes_accessed),
    )(x_flat, w1t, w2t)


# ---------------------------------------------------------------------------
# Path B: HW-tiled two-kernel fallback (large feature maps / N==1 on v7x /
# large unaligned H*W).
# ---------------------------------------------------------------------------
def _ca_pool_mlp_kernel(x_ref, w1t_ref, w2t_ref, att_ref, s_acc, m_acc, *,
                        hw_total):
    # x_ref: (1, C, tile) — one spatial tile of one batch element.
    _, c, tile = x_ref.shape
    j = pl.program_id(1)
    n_j = pl.num_programs(1)
    n_lane = tile // _LANE
    needs_mask = (hw_total % tile) != 0

    @pl.when(j == 0)
    def _():
        s_acc[...] = jnp.zeros_like(s_acc)
        m_acc[...] = jnp.full_like(m_acc, -jnp.inf)

    base = j * tile

    def pool_body(k, carry):
        s, m = carry
        start = pl.multiple_of(k * _LANE, _LANE)
        xc = x_ref[:, :, pl.ds(start, _LANE)].astype(jnp.float32)
        if needs_mask:
            col = jax.lax.broadcasted_iota(jnp.int32, xc.shape, 2) + (base + start)
            valid = col < hw_total
            s = s + jnp.where(valid, xc, 0.0)
            m = jnp.maximum(m, jnp.where(valid, xc, -jnp.inf))
        else:
            s = s + xc
            m = jnp.maximum(m, xc)
        return s, m

    s, m = jax.lax.fori_loop(0, n_lane, pool_body, (s_acc[...], m_acc[...]),
                             unroll=min(8, n_lane))
    s_acc[...] = s
    m_acc[...] = m

    @pl.when(j == n_j - 1)
    def _():
        s_vec = jnp.sum(s_acc[...], axis=-1)                      # (1, C)
        m_vec = jnp.max(m_acc[...], axis=-1)                      # (1, C)
        avg = s_vec * (1.0 / hw_total)
        att = _shared_mlp_sigmoid(avg, m_vec, w1t_ref[...], w2t_ref[...])
        att_ref[...] = att[None].astype(att_ref.dtype)            # (1, 1, C)


def _ca_apply_kernel(att_ref, x_ref, o_ref):
    # att_ref: (1, C, 1);  x_ref / o_ref: (1, C, tile).
    a = att_ref[...]
    _, _, tile = x_ref.shape
    n_lane = tile // _LANE
    upcast = x_ref.dtype != att_ref.dtype

    def body(k, _):
        start = pl.multiple_of(k * _LANE, _LANE)
        xc = x_ref[:, :, pl.ds(start, _LANE)]
        if upcast:
            xc = xc.astype(att_ref.dtype)
        o_ref[:, :, pl.ds(start, _LANE)] = (a * xc).astype(o_ref.dtype)
        return 0

    jax.lax.fori_loop(0, n_lane, body, 0, unroll=min(8, n_lane))


def _channel_attention_hw_tiled(x_flat, w1t, w2t, *, hidden, hw_tile,
                                apply_f32, cfg, itemsize):
    N, C, HW = x_flat.shape
    tile = _pick_hw_tile(HW, C, itemsize, requested=hw_tile)
    n_hw = pl.cdiv(HW, tile)

    # ---- Kernel 1: pooling (accumulated over HW tiles) + MLP + sigmoid.
    att = pl.pallas_call(
        functools.partial(_ca_pool_mlp_kernel, hw_total=HW),
        out_shape=jax.ShapeDtypeStruct((N, 1, C), jnp.float32),
        grid_spec=pltpu.PrefetchScalarGridSpec(
            num_scalar_prefetch=0,
            grid=(N, n_hw),
            in_specs=[
                pl.BlockSpec((1, C, tile), lambda i, j: (i, 0, j)),
                pl.BlockSpec((C, hidden), lambda i, j: (0, 0)),
                pl.BlockSpec((hidden, C), lambda i, j: (0, 0)),
            ],
            out_specs=pl.BlockSpec((1, 1, C), lambda i, j: (i, 0, 0)),
            scratch_shapes=[pltpu.VMEM((1, C, _LANE), jnp.float32),
                            pltpu.VMEM((1, C, _LANE), jnp.float32)],
        ),
        compiler_params=pltpu.CompilerParams(
            dimension_semantics=("parallel", "arbitrary"),
            vmem_limit_bytes=cfg["vmem_limit"]),
        cost_estimate=pl.CostEstimate(
            flops=int(2 * N * C * HW + 8 * N * C * hidden),
            transcendentals=int(N * C),
            bytes_accessed=int(N * C * HW * itemsize)),
    )(x_flat, w1t, w2t)

    # (N,1,C) -> (N,C,1): pure relabeling of a size-1 axis (tiny XLA op) so the
    # apply kernel broadcasts along lanes with no in-kernel transpose.
    att3 = att.reshape(N, C, 1)
    if not apply_f32:
        att3 = att3.astype(x_flat.dtype)

    # ---- Kernel 2: out = att * x, streamed over (batch, HW tiles).
    return pl.pallas_call(
        _ca_apply_kernel,
        out_shape=jax.ShapeDtypeStruct((N, C, HW), x_flat.dtype),
        grid_spec=pltpu.PrefetchScalarGridSpec(
            num_scalar_prefetch=0,
            grid=(N, n_hw),
            in_specs=[
                pl.BlockSpec((1, C, 1), lambda i, j: (i, 0, 0)),
                pl.BlockSpec((1, C, tile), lambda i, j: (i, 0, j)),
            ],
            out_specs=pl.BlockSpec((1, C, tile), lambda i, j: (i, 0, j)),
        ),
        compiler_params=pltpu.CompilerParams(
            dimension_semantics=("parallel", "parallel"),
            vmem_limit_bytes=cfg["vmem_limit"]),
        cost_estimate=pl.CostEstimate(
            flops=int(N * C * HW), transcendentals=0,
            bytes_accessed=int(2 * N * C * HW * itemsize)),
    )(att3, x_flat)


# ---------------------------------------------------------------------------
# Public entry point.
# ---------------------------------------------------------------------------
def channel_attention(x, w1, w2, *, hw_tile=None, force_hw_tiled=False):
    """ChannelAttention forward.  x: (N, C, H, W); w1: (C//r, C); w2: (C, C//r)."""
    N, C, H, W = x.shape
    HW = H * W
    hidden = w1.shape[0]
    assert w1.shape == (hidden, C) and w2.shape == (C, hidden)

    cfg = _tpu_config()
    itemsize = int(jnp.dtype(x.dtype).itemsize)
    x_flat = x.reshape(N, C, HW)
    # Pre-transposed, f32 weights: no in-kernel transpose or per-call cast.
    w1t = jnp.transpose(w1).astype(jnp.float32)                    # (C, hidden)
    w2t = jnp.transpose(w2).astype(jnp.float32)                    # (hidden, C)
    # bf16 apply on v6e/v7x (bf16 VPU); f32 apply elsewhere.
    apply_f32 = not (x.dtype == jnp.bfloat16 and cfg["bf16_vpu"])

    per_batch_bytes = 4 * C * HW * itemsize        # in + out, double-buffered
    single_fits = per_batch_bytes <= cfg["data_budget"]
    unaligned_big = (HW % _LANE != 0) and (C * HW * 4 > (1 << 20))
    split_n1 = cfg["multi_tc"] and N == 1 and (C * HW * itemsize >= (4 << 20))
    use_hw_tiled = (force_hw_tiled or (not single_fits)
                    or unaligned_big or split_n1)

    if use_hw_tiled:
        out_flat = _channel_attention_hw_tiled(
            x_flat, w1t, w2t, hidden=hidden, hw_tile=hw_tile,
            apply_f32=apply_f32, cfg=cfg, itemsize=itemsize)
    else:
        out_flat = _channel_attention_batched(
            x_flat, w1t, w2t, hidden=hidden, apply_f32=apply_f32,
            cfg=cfg, itemsize=itemsize, per_batch_bytes=per_batch_bytes)
    return out_flat.reshape(N, C, H, W)


# ---------------------------------------------------------------------------
# Pure-JAX reference (matches the PyTorch forward).
# ---------------------------------------------------------------------------
def _reference(x, w1, w2):
    avg = jnp.mean(x, axis=(2, 3))                                 # (N, C)
    mx = jnp.max(x, axis=(2, 3))                                   # (N, C)

    def fc(p):
        h = jnp.maximum(p @ w1.T, 0.0)
        return h @ w2.T

    att = jax.nn.sigmoid(fc(avg) + fc(mx))
    return att[:, :, None, None] * x


if __name__ == "__main__":
    # Shapes consistent with the module: in_planes=64, ratio=16 -> hidden=4.
    N, C, H, W = 2, 64, 16, 16
    ratio = 16
    hidden = C // ratio

    key = jax.random.PRNGKey(0)
    kx, k1, k2 = jax.random.split(key, 3)
    x = jax.random.normal(kx, (N, C, H, W), dtype=jnp.float32)
    w1 = jax.random.normal(k1, (hidden, C), dtype=jnp.float32) * 0.1
    w2 = jax.random.normal(k2, (C, hidden), dtype=jnp.float32) * 0.1

    # 1) fused batch-blocked path, f32.
    out = jax.block_until_ready(channel_attention(x, w1, w2))
    ref = _reference(x, w1, w2)
    assert out.shape == (N, C, H, W)
    assert jnp.allclose(out, ref, atol=1e-5, rtol=1e-5), "f32 mismatch"

    # 2) fused path, bf16 storage (bf16 apply on v6e/v7x, f32 math for pooling/MLP).
    x_bf16 = x.astype(jnp.bfloat16)
    out_bf16 = jax.block_until_ready(channel_attention(x_bf16, w1, w2))
    ref_bf16 = _reference(x_bf16.astype(jnp.float32), w1, w2)
    assert jnp.allclose(out_bf16.astype(jnp.float32), ref_bf16,
                        atol=5e-2, rtol=5e-2), "bf16 mismatch"

    # 3) HW-tiled two-kernel fallback, evenly dividing tiles.
    xb = jax.random.normal(kx, (2, C, 32, 32), dtype=jnp.float32)
    out_b = jax.block_until_ready(
        channel_attention(xb, w1, w2, force_hw_tiled=True, hw_tile=256))
    assert jnp.allclose(out_b, _reference(xb, w1, w2),
                        atol=1e-5, rtol=1e-5), "hw-tiled mismatch"

    # 4) HW-tiled fallback with a partial (masked) boundary tile: H*W = 400.
    xc = jax.random.normal(k1, (1, C, 20, 20), dtype=jnp.float32)
    out_c = jax.block_until_ready(
        channel_attention(xc, w1, w2, force_hw_tiled=True, hw_tile=256))
    assert jnp.allclose(out_c, _reference(xc, w1, w2),
                        atol=1e-5, rtol=1e-5), "masked boundary-tile mismatch"

    print("KERNEL_OK")
</pallas_src>

<mosaic_0001>
module attributes {stable_mosaic.version = 11 : i64} {
  func.func @_ca_fused_kernel(%arg0: i32, %arg1: memref<2x64x256xf32, #tpu.memory_space<vmem>>, %arg2: memref<64x4xf32, #tpu.memory_space<vmem>>, %arg3: memref<4x64xf32, #tpu.memory_space<vmem>>, %arg4: memref<2x64x256xf32, #tpu.memory_space<vmem>>) attributes {dimension_semantics = [#tpu.dimension_semantics<parallel>], iteration_bounds = array<i64: 1>, scalar_prefetch = 0 : i64, scratch_operands = 0 : i64, tpu.core_type = #tpu.core_type<tc>, window_params = [{transform_indices = @transform_0, window_bounds = array<i64: 2, 64, 256>}, {pipeline_mode = #tpu.pipeline_mode<synchronous>, transform_indices = @transform_1, window_bounds = array<i64: 64, 4>}, {pipeline_mode = #tpu.pipeline_mode<synchronous>, transform_indices = @transform_2, window_bounds = array<i64: 4, 64>}, {transform_indices = @transform_3, window_bounds = array<i64: 2, 64, 256>}]} {
    %cst = arith.constant 0.000000e+00 : f32
    %0 = vector.broadcast %cst : f32 to vector<2x64x128xf32>
    %cst_0 = arith.constant 0xFF800000 : f32
    %1 = vector.broadcast %cst_0 : f32 to vector<2x64x128xf32>
    %c0_i32 = arith.constant 0 : i32
    %c128_i32 = arith.constant 128 : i32
    %2 = arith.muli %c0_i32, %c128_i32 : i32
    %3 = tpu.assume_multiple %2, 128 : i32
    %c0 = arith.constant 0 : index
    %c0_1 = arith.constant 0 : index
    %4 = arith.index_cast %3 : i32 to index
    %5 = vector.load %arg1[%c0, %c0_1, %4] : memref<2x64x256xf32, #tpu.memory_space<vmem>>, vector<2x64x128xf32>
    %6 = arith.addf %0, %5 : vector<2x64x128xf32>
    %7 = arith.maximumf %1, %5 : vector<2x64x128xf32>
    %c1_i32 = arith.constant 1 : i32
    %c128_i32_2 = arith.constant 128 : i32
    %8 = arith.muli %c1_i32, %c128_i32_2 : i32
    %9 = tpu.assume_multiple %8, 128 : i32
    %c0_3 = arith.constant 0 : index
    %c0_4 = arith.constant 0 : index
    %10 = arith.index_cast %9 : i32 to index
    %11 = vector.load %arg1[%c0_3, %c0_4, %10] : memref<2x64x256xf32, #tpu.memory_space<vmem>>, vector<2x64x128xf32>
    %12 = arith.addf %6, %11 : vector<2x64x128xf32>
    %13 = arith.maximumf %7, %11 : vector<2x64x128xf32>
    %c2_i32 = arith.constant 2 : i32
    %cst_5 = arith.constant dense<0.000000e+00> : vector<2x64xf32>
    %14 = vector.multi_reduction <add>, %12, %cst_5 [2] : vector<2x64x128xf32> to vector<2x64xf32>
    %cst_6 = arith.constant dense<0xFF800000> : vector<2x64xf32>
    %15 = vector.multi_reduction <maximumf>, %13, %cst_6 [2] : vector<2x64x128xf32> to vector<2x64xf32>
    %cst_7 = arith.constant 3.906250e-03 : f32
    %16 = vector.broadcast %cst_7 : f32 to vector<2x64xf32>
    %17 = arith.mulf %14, %16 : vector<2x64xf32>
    %c0_8 = arith.constant 0 : index
    %c0_9 = arith.constant 0 : index
    %18 = vector.load %arg2[%c0_8, %c0_9] : memref<64x4xf32, #tpu.memory_space<vmem>>, vector<64x4xf32>
    %c0_10 = arith.constant 0 : index
    %c0_11 = arith.constant 0 : index
    %19 = vector.load %arg3[%c0_10, %c0_11] : memref<4x64xf32, #tpu.memory_space<vmem>>, vector<4x64xf32>
    %20 = tpu.concatenate %17, %15 in 0 : vector<2x64xf32>, vector<2x64xf32> -> vector<4x64xf32>
    %cst_12 = arith.constant dense<0.000000e+00> : vector<4x4xf32>
    %21 = tpu.matmul %20, %18, %cst_12 {dimension_numbers = #tpu.dot_dimension_numbers<[1], [0], [0], [1], [0, 0, 1, 1], [], []>} : vector<4x64xf32>, vector<64x4xf32>, vector<4x4xf32> -> vector<4x4xf32>
    %cst_13 = arith.constant 0.000000e+00 : f32
    %22 = vector.broadcast %cst_13 : f32 to vector<4x4xf32>
    %23 = arith.maximumf %21, %22 : vector<4x4xf32>
    %cst_14 = arith.constant dense<0.000000e+00> : vector<4x64xf32>
    %24 = tpu.matmul %23, %19, %cst_14 {dimension_numbers = #tpu.dot_dimension_numbers<[1], [0], [0], [1], [0, 0, 1, 1], [], []>} : vector<4x4xf32>, vector<4x64xf32>, vector<4x64xf32> -> vector<4x64xf32>
    %25 = vector.extract_strided_slice %24 {offsets = [0, 0], sizes = [2, 64], strides = [1, 1]} : vector<4x64xf32> to vector<2x64xf32>
    %26 = vector.extract_strided_slice %24 {offsets = [2, 0], sizes = [2, 64], strides = [1, 1]} : vector<4x64xf32> to vector<2x64xf32>
    %27 = arith.addf %25, %26 : vector<2x64xf32>
    %28 = arith.negf %27 : vector<2x64xf32>
    %29 = math.exp %28 : vector<2x64xf32>
    %cst_15 = arith.constant 1.000000e+00 : f32
    %30 = vector.broadcast %cst_15 : f32 to vector<2x64xf32>
    %31 = arith.addf %30, %29 : vector<2x64xf32>
    %32 = arith.divf %30, %31 : vector<2x64xf32>
    %33 = vector.shape_cast %32 : vector<2x64xf32> to vector<2x64x1xf32>
    %c0_i32_16 = arith.constant 0 : i32
    %c128_i32_17 = arith.constant 128 : i32
    %34 = arith.muli %c0_i32_16, %c128_i32_17 : i32
    %35 = tpu.assume_multiple %34, 128 : i32
    %c0_18 = arith.constant 0 : index
    %c0_19 = arith.constant 0 : index
    %36 = arith.index_cast %35 : i32 to index
    %37 = vector.load %arg1[%c0_18, %c0_19, %36] : memref<2x64x256xf32, #tpu.memory_space<vmem>>, vector<2x64x128xf32>
    %38 = vector.broadcast %33 : vector<2x64x1xf32> to vector<2x64x128xf32>
    %39 = arith.mulf %38, %37 : vector<2x64x128xf32>
    %c0_20 = arith.constant 0 : index
    %c0_21 = arith.constant 0 : index
    %40 = arith.index_cast %35 : i32 to index
    %41 = vector.load %arg4[%c0_20, %c0_21, %40] : memref<2x64x256xf32, #tpu.memory_space<vmem>>, vector<2x64x128xf32>
    tpu.vector_store %arg4[%c0_20, %c0_21, %40], %39 {strides = array<i32>} : memref<2x64x256xf32, #tpu.memory_space<vmem>>, vector<2x64x128xf32>,
    %c1_i32_22 = arith.constant 1 : i32
    %c128_i32_23 = arith.constant 128 : i32
    %42 = arith.muli %c1_i32_22, %c128_i32_23 : i32
    %43 = tpu.assume_multiple %42, 128 : i32
    %c0_24 = arith.constant 0 : index
    %c0_25 = arith.constant 0 : index
    %44 = arith.index_cast %43 : i32 to index
    %45 = vector.load %arg1[%c0_24, %c0_25, %44] : memref<2x64x256xf32, #tpu.memory_space<vmem>>, vector<2x64x128xf32>
    %46 = vector.broadcast %33 : vector<2x64x1xf32> to vector<2x64x128xf32>
    %47 = arith.mulf %46, %45 : vector<2x64x128xf32>
    %c0_26 = arith.constant 0 : index
    %c0_27 = arith.constant 0 : index
    %48 = arith.index_cast %43 : i32 to index
    %49 = vector.load %arg4[%c0_26, %c0_27, %48] : memref<2x64x256xf32, #tpu.memory_space<vmem>>, vector<2x64x128xf32>
    tpu.vector_store %arg4[%c0_26, %c0_27, %48], %47 {strides = array<i32>} : memref<2x64x256xf32, #tpu.memory_space<vmem>>, vector<2x64x128xf32>,
    %c2_i32_28 = arith.constant 2 : i32
    return
  }
  func.func @transform_0(%arg0: i32) -> (i32, i32, i32) {
    %c0_i32 = arith.constant 0 : i32
    %c0_i32_0 = arith.constant 0 : i32
    %c0_i32_1 = arith.constant 0 : i32
    return %arg0, %c0_i32, %c0_i32_0 : i32, i32, i32
  }
  func.func @transform_1(%arg0: i32) -> (i32, i32) {
    %c0_i32 = arith.constant 0 : i32
    %c0_i32_0 = arith.constant 0 : i32
    %c0_i32_1 = arith.constant 0 : i32
    return %c0_i32, %c0_i32_0 : i32, i32
  }
  func.func @transform_2(%arg0: i32) -> (i32, i32) {
    %c0_i32 = arith.constant 0 : i32
    %c0_i32_0 = arith.constant 0 : i32
    %c0_i32_1 = arith.constant 0 : i32
    return %c0_i32, %c0_i32_0 : i32, i32
  }
  func.func @transform_3(%arg0: i32) -> (i32, i32, i32) {
    %c0_i32 = arith.constant 0 : i32
    %c0_i32_0 = arith.constant 0 : i32
    %c0_i32_1 = arith.constant 0 : i32
    return %arg0, %c0_i32, %c0_i32_0 : i32, i32, i32
  }
}

</mosaic_0001>

<llo_original>
// kernel: tpu_custom_call.1
$region0: #{tpu_custom_call.1}
  #allocation0 [shape = 'u32[]', space=smem, size = 0x4, offset = 0x4, fixed_abs, tag = 'smem constant byte address 0x4 - core index']
  #allocation1 [shape = 'u32[144,128]{1,0:T(1,128)}', space=vmem, size = 0x12000, scoped, tag = 'internal scratch']
  %s0 = inlined_call_operand.hbm [shape: f32[2,64,256], index: 0, kind: input, shape index: {}]
  %s1 = inlined_call_operand.vmem [shape: f32[64,4], index: 1, kind: input, shape index: {}]
  %s2 = inlined_call_operand.vmem [shape: f32[4,64], index: 2, kind: input, shape index: {}]
  %s3 = inlined_call_operand.hbm [shape: f32[2,64,256], index: 3, kind: output, shape index: {}]
  %s4 = sld [smem:[#allocation0]]
  $region26: #{tpu_custom_call.1} parent=0
    _
  %s6 = ssub.s32 1, %s4
  %s7 = scalar_select 0, %s6, %s4
  $region1: #{tpu_custom_call.1} parent=0
    #allocation2 [shape = 'u8[131072]{0}', space=vmem, size = 0x20000, scoped, tag = 'input window, operand 0, single buffered']
    #allocation3 [shape = 's32[1]{0}', space=sflag, size = 0x4, scoped, tag = 'scoped memory for tpu_custom_call.1']
    #allocation4 [shape = 's32[1]{0}', space=sflag, size = 0x4, scoped, tag = 'scoped memory for tpu_custom_call.1']
    #allocation5 [shape = 'u8[131072]{0}', space=vmem, size = 0x20000, scoped, tag = 'output window, operand 0, single buffered']
    %8 = vsyncpa [#allocation3], 0
    %9 = vsyncpa [#allocation4], 0
    // Predicated region
    $region2: #{tpu_custom_call.1} parent=1 // pred_check
      _
    $region3: #{tpu_custom_call.1} parent=1 // pred_check_branch
      %11 = sbr.rel (0) target = $region5
    $region4: #{tpu_custom_call.1} parent=1 // pred_region
      %s13 = ssub.s32 4096, 4096
      %14 = vsyncadd [#allocation3], %s13
      %s15 = sshll.u32 [#allocation2], 4
      %s16 = int_to_ptr.vmem [resolvable:$true] %s15
      %21 = dma.hbm_to_vmem [thread:$0]  %s0, 4096, %s16, [#allocation3], 256, 256, 16
    $region5: #{tpu_custom_call.1} parent=1 // pred_fallthru
      _
    // Predicated region
    $region6: #{tpu_custom_call.1} parent=1 // pred_check
      _
    $region7: #{tpu_custom_call.1} parent=1 // pred_check_branch
      %23 = sbr.rel (0) target = $region9
    $region8: #{tpu_custom_call.1} parent=1 // pred_region
      _
    $region9: #{tpu_custom_call.1} parent=1 // pred_fallthru
      _
    // Predicated region
    $region10: #{tpu_custom_call.1} parent=1 // pred_check
      _
    $region11: #{tpu_custom_call.1} parent=1 // pred_check_branch
      %25 = sbr.rel (0) target = $region13
    $region12: #{tpu_custom_call.1} parent=1 // pred_region
      _
    $region13: #{tpu_custom_call.1} parent=1 // pred_fallthru
      _
    // Predicated region
    $region14: #{tpu_custom_call.1} parent=1 // pred_check
      _
    $region15: #{tpu_custom_call.1} parent=1 // pred_check_branch
      %27 = sbr.rel (0) target = $region17
    $region16: #{tpu_custom_call.1} parent=1 // pred_region
      %28 = dma.done [#allocation3], 4096
    $region17: #{tpu_custom_call.1} parent=1 // pred_fallthru
      _
    %v29 = vld [vmem:[#allocation2] sm:$0xff]
    %v30 = vld [vmem:[#allocation2 + $0x10] sm:$0xff]
    %v31 = vld [vmem:[#allocation2 + $0x20] sm:$0xff]
    %v32 = vld [vmem:[#allocation2 + $0x30] sm:$0xff]
    %v33 = vld [vmem:[#allocation2 + $0x40] sm:$0xff]
    %v34 = vld [vmem:[#allocation2 + $0x50] sm:$0xff]
    %v35 = vld [vmem:[#allocation2 + $0x60] sm:$0xff]
    %v36 = vld [vmem:[#allocation2 + $0x70] sm:$0xff]
    %v37 = vld [vmem:[#allocation2 + $0x80] sm:$0xff]
    %v38 = vld [vmem:[#allocation2 + $0x90] sm:$0xff]
    %v39 = vld [vmem:[#allocation2 + $0xa0] sm:$0xff]
    %v40 = vld [vmem:[#allocation2 + $0xb0] sm:$0xff]
    %v41 = vld [vmem:[#allocation2 + $0xc0] sm:$0xff]
    %v42 = vld [vmem:[#allocation2 + $0xd0] sm:$0xff]
    %v43 = vld [vmem:[#allocation2 + $0xe0] sm:$0xff]
    %v44 = vld [vmem:[#allocation2 + $0xf0] sm:$0xff]
    %v45 = vadd.f32 %v29, 0.0
    %v46 = vadd.f32 %v30, 0.0
    %v47 = vadd.f32 %v31, 0.0
    %v48 = vadd.f32 %v32, 0.0
    %v49 = vadd.f32 %v33, 0.0
    %v50 = vadd.f32 %v34, 0.0
    %v51 = vadd.f32 %v35, 0.0
    %v52 = vadd.f32 %v36, 0.0
    %v53 = vadd.f32 %v37, 0.0
    %v54 = vadd.f32 %v38, 0.0
    %v55 = vadd.f32 %v39, 0.0
    %v56 = vadd.f32 %v40, 0.0
    %v57 = vadd.f32 %v41, 0.0
    %v58 = vadd.f32 %v42, 0.0
    %v59 = vadd.f32 %v43, 0.0
    %v60 = vadd.f32 %v44, 0.0
    %s61 = scalar_lea.vmem [#allocation2], 8
    %v62 = vld [vmem:[%s61] sm:$0xff]
    %v63 = vld [vmem:[%s61 + $0x10] sm:$0xff]
    %v64 = vld [vmem:[%s61 + $0x20] sm:$0xff]
    %v65 = vld [vmem:[%s61 + $0x30] sm:$0xff]
    %v66 = vld [vmem:[%s61 + $0x40] sm:$0xff]
    %v67 = vld [vmem:[%s61 + $0x50] sm:$0xff]
    %v68 = vld [vmem:[%s61 + $0x60] sm:$0xff]
    %v69 = vld [vmem:[%s61 + $0x70] sm:$0xff]
    %v70 = vld [vmem:[%s61 + $0x80] sm:$0xff]
    %v71 = vld [vmem:[%s61 + $0x90] sm:$0xff]
    %v72 = vld [vmem:[%s61 + $0xa0] sm:$0xff]
    %v73 = vld [vmem:[%s61 + $0xb0] sm:$0xff]
    %v74 = vld [vmem:[%s61 + $0xc0] sm:$0xff]
    %v75 = vld [vmem:[%s61 + $0xd0] sm:$0xff]
    %v76 = vld [vmem:[%s61 + $0xe0] sm:$0xff]
    %v77 = vld [vmem:[%s61 + $0xf0] sm:$0xff]
    %v78 = vadd.f32 %v45, %v62
    %v79 = vadd.f32 %v46, %v63
    %v80 = vadd.f32 %v47, %v64
    %v81 = vadd.f32 %v48, %v65
    %v82 = vadd.f32 %v49, %v66
    %v83 = vadd.f32 %v50, %v67
    %v84 = vadd.f32 %v51, %v68
    %v85 = vadd.f32 %v52, %v69
    %v86 = vadd.f32 %v53, %v70
    %v87 = vadd.f32 %v54, %v71
    %v88 = vadd.f32 %v55, %v72
    %v89 = vadd.f32 %v56, %v73
    %v90 = vadd.f32 %v57, %v74
    %v91 = vadd.f32 %v58, %v75
    %v92 = vadd.f32 %v59, %v76
    %v93 = vadd.f32 %v60, %v77
    %v94 = vmax.f32 %v29, %v62
    %v95 = vmax.f32 %v30, %v63
    %v96 = vmax.f32 %v31, %v64
    %v97 = vmax.f32 %v32, %v65
    %v98 = vmax.f32 %v33, %v66
    %v99 = vmax.f32 %v34, %v67
    %v100 = vmax.f32 %v35, %v68
    %v101 = vmax.f32 %v36, %v69
    %v102 = vmax.f32 %v37, %v70
    %v103 = vmax.f32 %v38, %v71
    %v104 = vmax.f32 %v39, %v72
    %v105 = vmax.f32 %v40, %v73
    %v106 = vmax.f32 %v41, %v74
    %v107 = vmax.f32 %v42, %v75
    %v108 = vmax.f32 %v43, %v76
    %v109 = vmax.f32 %v44, %v77
    %110 = vadd.xlane.f32.xlu0 %v78
    %v111 = vpop.xlane.xlu0 %110
    %112 = vadd.xlane.f32.xlu0 %v79
    %v113 = vpop.xlane.xlu0 %112
    %114 = vadd.xlane.f32.xlu0 %v80
    %v115 = vpop.xlane.xlu0 %114
    %116 = vadd.xlane.f32.xlu0 %v81
    %v117 = vpop.xlane.xlu0 %116
    %118 = vadd.xlane.f32.xlu0 %v82
    %v119 = vpop.xlane.xlu0 %118
    %120 = vadd.xlane.f32.xlu0 %v83
    %v121 = vpop.xlane.xlu0 %120
    %122 = vadd.xlane.f32.xlu0 %v84
    %v123 = vpop.xlane.xlu0 %122
    %124 = vadd.xlane.f32.xlu0 %v85
    %v125 = vpop.xlane.xlu0 %124
    %126 = vadd.xlane.f32.xlu0 %v86
    %v127 = vpop.xlane.xlu0 %126
    %128 = vadd.xlane.f32.xlu0 %v87
    %v129 = vpop.xlane.xlu0 %128
    %130 = vadd.xlane.f32.xlu0 %v88
    %v131 = vpop.xlane.xlu0 %130
    %132 = vadd.xlane.f32.xlu0 %v89
    %v133 = vpop.xlane.xlu0 %132
    %134 = vadd.xlane.f32.xlu0 %v90
    %v135 = vpop.xlane.xlu0 %134
    %136 = vadd.xlane.f32.xlu0 %v91
    %v137 = vpop.xlane.xlu0 %136
    %138 = vadd.xlane.f32.xlu0 %v92
    %v139 = vpop.xlane.xlu0 %138
    %140 = vadd.xlane.f32.xlu0 %v93
    %v141 = vpop.xlane.xlu0 %140
    %142 = vmax.xlane.f32.xlu0 %v94
    %v143 = vpop.xlane.xlu0 %142
    %144 = vmax.xlane.f32.xlu0 %v95
    %v145 = vpop.xlane.xlu0 %144
    %146 = vmax.xlane.f32.xlu0 %v96
    %v147 = vpop.xlane.xlu0 %146
    %148 = vmax.xlane.f32.xlu0 %v97
    %v149 = vpop.xlane.xlu0 %148
    %150 = vmax.xlane.f32.xlu0 %v98
    %v151 = vpop.xlane.xlu0 %150
    %152 = vmax.xlane.f32.xlu0 %v99
    %v153 = vpop.xlane.xlu0 %152
    %154 = vmax.xlane.f32.xlu0 %v100
    %v155 = vpop.xlane.xlu0 %154
    %156 = vmax.xlane.f32.xlu0 %v101
    %v157 = vpop.xlane.xlu0 %156
    %158 = vmax.xlane.f32.xlu0 %v102
    %v159 = vpop.xlane.xlu0 %158
    %160 = vmax.xlane.f32.xlu0 %v103
    %v161 = vpop.xlane.xlu0 %160
    %162 = vmax.xlane.f32.xlu0 %v104
    %v163 = vpop.xlane.xlu0 %162
    %164 = vmax.xlane.f32.xlu0 %v105
    %v165 = vpop.xlane.xlu0 %164
    %166 = vmax.xlane.f32.xlu0 %v106
    %v167 = vpop.xlane.xlu0 %166
    %168 = vmax.xlane.f32.xlu0 %v107
    %v169 = vpop.xlane.xlu0 %168
    %170 = vmax.xlane.f32.xlu0 %v108
    %v171 = vpop.xlane.xlu0 %170
    %172 = vmax.xlane.f32.xlu0 %v109
    %v173 = vpop.xlane.xlu0 %172
    %v174 = vmul.f32 %v111, 0.00390625
    %v175 = vmul.f32 %v113, 0.00390625
    %v176 = vmul.f32 %v115, 0.00390625
    %v177 = vmul.f32 %v117, 0.00390625
    %v178 = vmul.f32 %v119, 0.00390625
    %v179 = vmul.f32 %v121, 0.00390625
    %v180 = vmul.f32 %v123, 0.00390625
    %v181 = vmul.f32 %v125, 0.00390625
    %v182 = vmul.f32 %v127, 0.00390625
    %v183 = vmul.f32 %v129, 0.00390625
    %v184 = vmul.f32 %v131, 0.00390625
    %v185 = vmul.f32 %v133, 0.00390625
    %v186 = vmul.f32 %v135, 0.00390625
    %v187 = vmul.f32 %v137, 0.00390625
    %v188 = vmul.f32 %v139, 0.00390625
    %v189 = vmul.f32 %v141, 0.00390625
    %v190 = vld [vmem:[%s1] sm:$0xff]
    %v191 = vld [vmem:[%s1 + $0x8] sm:$0xff]
    %v192 = vld [vmem:[%s1 + $0x10] sm:$0xff]
    %v193 = vld [vmem:[%s1 + $0x18] sm:$0xff]
    %v194 = vld [vmem:[%s1 + $0x20] sm:$0xff]
    %v195 = vld [vmem:[%s1 + $0x28] sm:$0xff]
    %v196 = vld [vmem:[%s1 + $0x30] sm:$0xff]
    %v197 = vld [vmem:[%s1 + $0x38] sm:$0xff]
    %v198 = vld [vmem:[%s2] sm:$0xf]
    %v215 = vlaneseq
    %v216 = vand.u32 %v215, 127
    %v217 = vlaneseq
    %v218 = vshrl.u32 %v217, 7
    %v219 = vsub.s32 %v216, %v218
    %v220 = vrot.slane %v174, %v219
    %v221 = vadd.s32 %v216, 4294967288
    %v222 = vlaneseq
    %v223 = vshrl.u32 %v222, 7
    %v224 = vsub.s32 %v221, %v223
    %v225 = vrot.slane %v175, %v224
    %vm226 = vcmask 130112
    %v227 = vsel %vm226, %v225, %v220
    %v228 = vadd.s32 %v216, 4294967280
    %v229 = vlaneseq
    %v230 = vshrl.u32 %v229, 7
    %v231 = vsub.s32 %v228, %v230
    %v232 = vrot.slane %v176, %v231
    %vm233 = vcmask 195712
    %v234 = vsel %vm233, %v232, %v227
    %v235 = vadd.s32 %v216, 4294967272
    %v236 = vlaneseq
    %v237 = vshrl.u32 %v236, 7
    %v238 = vsub.s32 %v235, %v237
    %v239 = vrot.slane %v177, %v238
    %vm240 = vcmask 261312
    %v241 = vsel %vm240, %v239, %v234
    %v242 = vadd.s32 %v216, 4294967264
    %v243 = vlaneseq
    %v244 = vshrl.u32 %v243, 7
    %v245 = vsub.s32 %v242, %v244
    %v246 = vrot.slane %v178, %v245
    %vm247 = vcmask 326912
    %v248 = vsel %vm247, %v246, %v241
    %v249 = vadd.s32 %v216, 4294967256
    %v250 = vlaneseq
    %v251 = vshrl.u32 %v250, 7
    %v252 = vsub.s32 %v249, %v251
    %v253 = vrot.slane %v179, %v252
    %vm254 = vcmask 392512
    %v255 = vsel %vm254, %v253, %v248
    %v256 = vadd.s32 %v216, 4294967248
    %v257 = vlaneseq
    %v258 = vshrl.u32 %v257, 7
    %v259 = vsub.s32 %v256, %v258
    %v260 = vrot.slane %v180, %v259
    %vm261 = vcmask 458112
    %v262 = vsel %vm261, %v260, %v255
    %v263 = vadd.s32 %v216, 4294967240
    %v264 = vlaneseq
    %v265 = vshrl.u32 %v264, 7
    %v266 = vsub.s32 %v263, %v265
    %v267 = vrot.slane %v181, %v266
    %vm268 = vcmask 523712
    %v269 = vsel %vm268, %v267, %v262
    %v270 = vlaneseq
    %v271 = vshrl.u32 %v270, 7
    %v272 = vsub.s32 %v216, %v271
    %v273 = vrot.slane %v182, %v272
    %v274 = vlaneseq
    %v275 = vshrl.u32 %v274, 7
    %v276 = vsub.s32 %v221, %v275
    %v277 = vrot.slane %v183, %v276
    %v278 = vsel %vm226, %v277, %v273
    %v279 = vlaneseq
    %v280 = vshrl.u32 %v279, 7
    %v281 = vsub.s32 %v228, %v280
    %v282 = vrot.slane %v184, %v281
    %v283 = vsel %vm233, %v282, %v278
    %v284 = vlaneseq
    %v285 = vshrl.u32 %v284, 7
    %v286 = vsub.s32 %v235, %v285
    %v287 = vrot.slane %v185, %v286
    %v288 = vsel %vm240, %v287, %v283
    %v289 = vlaneseq
    %v290 = vshrl.u32 %v289, 7
    %v291 = vsub.s32 %v242, %v290
    %v292 = vrot.slane %v186, %v291
    %v293 = vsel %vm247, %v292, %v288
    %v294 = vlaneseq
    %v295 = vshrl.u32 %v294, 7
    %v296 = vsub.s32 %v249, %v295
    %v297 = vrot.slane %v187, %v296
    %v298 = vsel %vm254, %v297, %v293
    %v299 = vlaneseq
    %v300 = vshrl.u32 %v299, 7
    %v301 = vsub.s32 %v256, %v300
    %v302 = vrot.slane %v188, %v301
    %v303 = vsel %vm261, %v302, %v298
    %v304 = vlaneseq
    %v305 = vshrl.u32 %v304, 7
    %v306 = vsub.s32 %v263, %v305
    %v307 = vrot.slane %v189, %v306
    %v308 = vsel %vm268, %v307, %v303
    %vm309 = vcmask 1041409
    %v310 = vsel %vm309, %v308, %v269
    %v328 = vlaneseq
    %v329 = vshrl.u32 %v328, 7
    %v330 = vsub.s32 %v216, %v329
    %v331 = vrot.slane %v143, %v330
    %v332 = vlaneseq
    %v333 = vshrl.u32 %v332, 7
    %v334 = vsub.s32 %v221, %v333
    %v335 = vrot.slane %v145, %v334
    %v336 = vsel %vm226, %v335, %v331
    %v337 = vlaneseq
    %v338 = vshrl.u32 %v337, 7
    %v339 = vsub.s32 %v228, %v338
    %v340 = vrot.slane %v147, %v339
    %v341 = vsel %vm233, %v340, %v336
    %v342 = vlaneseq
    %v343 = vshrl.u32 %v342, 7
    %v344 = vsub.s32 %v235, %v343
    %v345 = vrot.slane %v149, %v344
    %v346 = vsel %vm240, %v345, %v341
    %v347 = vlaneseq
    %v348 = vshrl.u32 %v347, 7
    %v349 = vsub.s32 %v242, %v348
    %v350 = vrot.slane %v151, %v349
    %v351 = vsel %vm247, %v350, %v346
    %v352 = vlaneseq
    %v353 = vshrl.u32 %v352, 7
    %v354 = vsub.s32 %v249, %v353
    %v355 = vrot.slane %v153, %v354
    %v356 = vsel %vm254, %v355, %v351
    %v357 = vlaneseq
    %v358 = vshrl.u32 %v357, 7
    %v359 = vsub.s32 %v256, %v358
    %v360 = vrot.slane %v155, %v359
    %v361 = vsel %vm261, %v360, %v356
    %v362 = vlaneseq
    %v363 = vshrl.u32 %v362, 7
    %v364 = vsub.s32 %v263, %v363
    %v365 = vrot.slane %v157, %v364
    %v366 = vsel %vm268, %v365, %v361
    %v367 = vlaneseq
    %v368 = vshrl.u32 %v367, 7
    %v369 = vsub.s32 %v216, %v368
    %v370 = vrot.slane %v159, %v369
    %v371 = vlaneseq
    %v372 = vshrl.u32 %v371, 7
    %v373 = vsub.s32 %v221, %v372
    %v374 = vrot.slane %v161, %v373
    %v375 = vsel %vm226, %v374, %v370
    %v376 = vlaneseq
    %v377 = vshrl.u32 %v376, 7
    %v378 = vsub.s32 %v228, %v377
    %v379 = vrot.slane %v163, %v378
    %v380 = vsel %vm233, %v379, %v375
    %v381 = vlaneseq
    %v382 = vshrl.u32 %v381, 7
    %v383 = vsub.s32 %v235, %v382
    %v384 = vrot.slane %v165, %v383
    %v385 = vsel %vm240, %v384, %v380
    %v386 = vlaneseq
    %v387 = vshrl.u32 %v386, 7
    %v388 = vsub.s32 %v242, %v387
    %v389 = vrot.slane %v167, %v388
    %v390 = vsel %vm247, %v389, %v385
    %v391 = vlaneseq
    %v392 = vshrl.u32 %v391, 7
    %v393 = vsub.s32 %v249, %v392
    %v394 = vrot.slane %v169, %v393
    %v395 = vsel %vm254, %v394, %v390
    %v396 = vlaneseq
    %v397 = vshrl.u32 %v396, 7
    %v398 = vsub.s32 %v256, %v397
    %v399 = vrot.slane %v171, %v398
    %v400 = vsel %vm261, %v399, %v395
    %v401 = vlaneseq
    %v402 = vshrl.u32 %v401, 7
    %v403 = vsub.s32 %v263, %v402
    %v404 = vrot.slane %v173, %v403
    %v405 = vsel %vm268, %v404, %v400
    %vm406 = vcmask 1043459
    %v407 = vsel %vm406, %v405, %v366
    %vm409 = vcmask 1041408
    %v410 = vsel %vm409, %v310, %v407
    %vm411 = vcmask 523264
    %v413 = vsel %vm411, %v410, 0
    %415 = vmatprep.subr.mxu0 0.0
    %416 = vmatpush1.msra.mxu0 %v190
    %417 = vmatprep.subr.mxu0 0.0
    %418 = vmatpush1.msra.mxu0 %v191
    %419 = vmatprep.subr.mxu0 0.0
    %420 = vmatpush1.msra.mxu0 %v192
    %421 = vmatprep.subr.mxu0 0.0
    %422 = vmatpush1.msra.mxu0 %v193
    %423 = vmatprep.subr.mxu0 0.0
    %424 = vmatpush1.msra.mxu0 %v194
    %425 = vmatprep.subr.mxu0 0.0
    %426 = vmatpush1.msra.mxu0 %v195
    %427 = vmatprep.subr.mxu0 0.0
    %428 = vmatpush1.msra.mxu0 %v196
    %429 = vmatprep.subr.mxu0 0.0
    %430 = vmatpush1.msra.mxu0 %v197
    %431 = vmatprep.subr.mxu0 0.0
    %432 = vmatpush1.msra.mxu0 0.0
    %433 = vmatprep.subr.mxu0 0.0
    %434 = vmatpush1.msra.mxu0 0.0
    %435 = vmatprep.subr.mxu0 0.0
    %436 = vmatpush1.msra.mxu0 0.0
    %437 = vmatprep.subr.mxu0 0.0
    %438 = vmatpush1.msra.mxu0 0.0
    %439 = vmatprep.subr.mxu0 0.0
    %440 = vmatpush1.msra.mxu0 0.0
    %441 = vmatprep.subr.mxu0 0.0
    %442 = vmatpush1.msra.mxu0 0.0
    %443 = vmatprep.subr.mxu0 0.0
    %444 = vmatpush1.msra.mxu0 0.0
    %445 = vmatprep.subr.mxu0 0.0
    %446 = vmatpush1.msra.mxu0 0.0
    %447 = vmatprep.subr.mxu0 0.0
    %448 = vmatpush1.msra.mxu0 0.0
    %449 = vmatprep.subr.mxu0 0.0
    %450 = vmatpush1.msra.mxu0 0.0
    %451 = vmatprep.subr.mxu0 0.0
    %452 = vmatpush1.msra.mxu0 0.0
    %453 = vmatprep.subr.mxu0 0.0
    %454 = vmatpush1.msra.mxu0 0.0
    %455 = vmatprep.subr.mxu0 0.0
    %456 = vmatpush1.msra.mxu0 0.0
    %457 = vmatprep.subr.mxu0 0.0
    %458 = vmatpush1.msra.mxu0 0.0
    %459 = vmatprep.subr.mxu0 0.0
    %460 = vmatpush1.msra.mxu0 0.0
    %461 = vmatprep.subr.mxu0 0.0
    %462 = vmatpush1.msra.mxu0 0.0
    %463 = vmatprep.subr.mxu0 0.0
    %464 = vmatpush1.msra.mxu0 0.0
    %465 = vmatprep.subr.mxu0 0.0
    %466 = vmatpush1.msra.mxu0 0.0
    %467 = vmatprep.subr.mxu0 0.0
    %468 = vmatpush1.msra.mxu0 0.0
    %469 = vmatprep.subr.mxu0 0.0
    %470 = vmatpush1.msra.mxu0 0.0
    %471 = vmatprep.subr.mxu0 0.0
    %472 = vmatpush1.msra.mxu0 0.0
    %473 = vmatprep.subr.mxu0 0.0
    %474 = vmatpush1.msra.mxu0 0.0
    %475 = vmatprep.subr.mxu0 0.0
    %476 = vmatpush1.msra.mxu0 0.0
    %477 = vmatprep.subr.mxu0 0.0
    %478 = vmatpush1.msra.mxu0 0.0
    %479 = vmatprep.mubr.f32.mxu0 0.0
    %480 = vmatmul.mubr.f32.gmra.mrb[0].mxu0 %v413
    %v481 = vpop.f32.mrb[0].mxu0
    %v482 = vadd.f32 0.0, %v481
    %v483 = vpop.f32.mrb[0].mxu0
    %484 = vdwg.mxu0
    %v485 = vmax.f32 %v482, 0.0
    %vm486 = vcmask 31744
    %v488 = vsel %vm486, %v485, 0
    %vm490 = vcmask 1043456
    %v492 = vsel %vm490, %v198, 0
    %494 = vmatprep.subr.mxu0 0.0
    %495 = vmatpush1.msra.mxu0 %v492
    %496 = vmatprep.subr.mxu0 0.0
    %497 = vmatpush1.msra.mxu0 0.0
    %498 = vmatprep.subr.mxu0 0.0
    %499 = vmatpush1.msra.mxu0 0.0
    %500 = vmatprep.subr.mxu0 0.0
    %501 = vmatpush1.msra.mxu0 0.0
    %502 = vmatprep.subr.mxu0 0.0
    %503 = vmatpush1.msra.mxu0 0.0
    %504 = vmatprep.subr.mxu0 0.0
    %505 = vmatpush1.msra.mxu0 0.0
    %506 = vmatprep.subr.mxu0 0.0
    %507 = vmatpush1.msra.mxu0 0.0
    %508 = vmatprep.subr.mxu0 0.0
    %509 = vmatpush1.msra.mxu0 0.0
    %510 = vmatprep.subr.mxu0 0.0
    %511 = vmatpush1.msra.mxu0 0.0
    %512 = vmatprep.subr.mxu0 0.0
    %513 = vmatpush1.msra.mxu0 0.0
    %514 = vmatprep.subr.mxu0 0.0
    %515 = vmatpush1.msra.mxu0 0.0
    %516 = vmatprep.subr.mxu0 0.0
    %517 = vmatpush1.msra.mxu0 0.0
    %518 = vmatprep.subr.mxu0 0.0
    %519 = vmatpush1.msra.mxu0 0.0
    %520 = vmatprep.subr.mxu0 0.0
    %521 = vmatpush1.msra.mxu0 0.0
    %522 = vmatprep.subr.mxu0 0.0
    %523 = vmatpush1.msra.mxu0 0.0
    %524 = vmatprep.subr.mxu0 0.0
    %525 = vmatpush1.msra.mxu0 0.0
    %526 = vmatprep.subr.mxu0 0.0
    %527 = vmatpush1.msra.mxu0 0.0
    %528 = vmatprep.subr.mxu0 0.0
    %529 = vmatpush1.msra.mxu0 0.0
    %530 = vmatprep.subr.mxu0 0.0
    %531 = vmatpush1.msra.mxu0 0.0
    %532 = vmatprep.subr.mxu0 0.0
    %533 = vmatpush1.msra.mxu0 0.0
    %534 = vmatprep.subr.mxu0 0.0
    %535 = vmatpush1.msra.mxu0 0.0
    %536 = vmatprep.subr.mxu0 0.0
    %537 = vmatpush1.msra.mxu0 0.0
    %538 = vmatprep.subr.mxu0 0.0
    %539 = vmatpush1.msra.mxu0 0.0
    %540 = vmatprep.subr.mxu0 0.0
    %541 = vmatpush1.msra.mxu0 0.0
    %542 = vmatprep.subr.mxu0 0.0
    %543 = vmatpush1.msra.mxu0 0.0
    %544 = vmatprep.subr.mxu0 0.0
    %545 = vmatpush1.msra.mxu0 0.0
    %546 = vmatprep.subr.mxu0 0.0
    %547 = vmatpush1.msra.mxu0 0.0
    %548 = vmatprep.subr.mxu0 0.0
    %549 = vmatpush1.msra.mxu0 0.0
    %550 = vmatprep.subr.mxu0 0.0
    %551 = vmatpush1.msra.mxu0 0.0
    %552 = vmatprep.subr.mxu0 0.0
    %553 = vmatpush1.msra.mxu0 0.0
    %554 = vmatprep.subr.mxu0 0.0
    %555 = vmatpush1.msra.mxu0 0.0
    %556 = vmatprep.subr.mxu0 0.0
    %557 = vmatpush1.msra.mxu0 0.0
    %558 = vmatprep.mubr.f32.mxu0 0.0
    %559 = vmatmul.mubr.f32.gmra.mrb[0].mxu0 %v488
    %v560 = vpop.f32.mrb[0].mxu0
    %v561 = vadd.f32 0.0, %v560
    %v562 = vpop.f32.mrb[0].mxu0
    %563 = vdwg.mxu0
    %v565 = vrot.slane %v561, 2
    %v567 = vadd.f32 %v561, %v565
    %v568 = vxor.u32 %v567, 2147483648
    %v569 = vmul.f32 %v568, 1.442695
    %v570 = vpow.pop %v569
    %v571 = vadd.f32 %v570, 1.0
    %v572 = vrcp.pop %v571
    %v573 = vmul.f32 1.0, %v572
    %v574 = vlaneseq
    %v575 = vshrl.u32 %v574, 7
    %v576 = vsub.s32 0, %v575
    %v577 = vrot.slane %v573, %v576
    %579 = vbcast.lane.b32.xlu0 %v577, 256
    %v580 = vpop.permute.xlu0 %579
    %s582 = sor.u32 256, 8
    %583 = vbcast.lane.b32.xlu0 %v577, %s582
    %v584 = vpop.permute.xlu0 %583
    %s586 = sor.u32 256, 16
    %587 = vbcast.lane.b32.xlu0 %v577, %s586
    %v588 = vpop.permute.xlu0 %587
    %s590 = sor.u32 256, 24
    %591 = vbcast.lane.b32.xlu0 %v577, %s590
    %v592 = vpop.permute.xlu0 %591
    %s594 = sor.u32 256, 32
    %595 = vbcast.lane.b32.xlu0 %v577, %s594
    %v596 = vpop.permute.xlu0 %595
    %s598 = sor.u32 256, 40
    %599 = vbcast.lane.b32.xlu0 %v577, %s598
    %v600 = vpop.permute.xlu0 %599
    %s602 = sor.u32 256, 48
    %603 = vbcast.lane.b32.xlu0 %v577, %s602
    %v604 = vpop.permute.xlu0 %603
    %s606 = sor.u32 256, 56
    %607 = vbcast.lane.b32.xlu0 %v577, %s606
    %v608 = vpop.permute.xlu0 %607
    %v609 = vlaneseq
    %v610 = vshrl.u32 %v609, 7
    %v611 = vsub.s32 1, %v610
    %v612 = vrot.slane %v573, %v611
    %614 = vbcast.lane.b32.xlu0 %v612, 256
    %v615 = vpop.permute.xlu0 %614
    %s617 = sor.u32 256, 8
    %618 = vbcast.lane.b32.xlu0 %v612, %s617
    %v619 = vpop.permute.xlu0 %618
    %s621 = sor.u32 256, 16
    %622 = vbcast.lane.b32.xlu0 %v612, %s621
    %v623 = vpop.permute.xlu0 %622
    %s625 = sor.u32 256, 24
    %626 = vbcast.lane.b32.xlu0 %v612, %s625
    %v627 = vpop.permute.xlu0 %626
    %s629 = sor.u32 256, 32
    %630 = vbcast.lane.b32.xlu0 %v612, %s629
    %v631 = vpop.permute.xlu0 %630
    %s633 = sor.u32 256, 40
    %634 = vbcast.lane.b32.xlu0 %v612, %s633
    %v635 = vpop.permute.xlu0 %634
    %s637 = sor.u32 256, 48
    %638 = vbcast.lane.b32.xlu0 %v612, %s637
    %v639 = vpop.permute.xlu0 %638
    %s641 = sor.u32 256, 56
    %642 = vbcast.lane.b32.xlu0 %v612, %s641
    %v643 = vpop.permute.xlu0 %642
    %v644 = vmul.f32 %v580, %v29
    %v645 = vmul.f32 %v584, %v30
    %v646 = vmul.f32 %v588, %v31
    %v647 = vmul.f32 %v592, %v32
    %v648 = vmul.f32 %v596, %v33
    %v649 = vmul.f32 %v600, %v34
    %v650 = vmul.f32 %v604, %v35
    %v651 = vmul.f32 %v608, %v36
    %v652 = vmul.f32 %v615, %v37
    %v653 = vmul.f32 %v619, %v38
    %v654 = vmul.f32 %v623, %v39
    %v655 = vmul.f32 %v627, %v40
    %v656 = vmul.f32 %v631, %v41
    %v657 = vmul.f32 %v635, %v42
    %v658 = vmul.f32 %v639, %v43
    %v659 = vmul.f32 %v643, %v44
    %660 = vst [vmem:[#allocation5] sm:$0xff] %v644
    %661 = vst [vmem:[#allocation5 + $0x10] sm:$0xff] %v645
    %662 = vst [vmem:[#allocation5 + $0x20] sm:$0xff] %v646
    %663 = vst [vmem:[#allocation5 + $0x30] sm:$0xff] %v647
    %664 = vst [vmem:[#allocation5 + $0x40] sm:$0xff] %v648
    %665 = vst [vmem:[#allocation5 + $0x50] sm:$0xff] %v649
    %666 = vst [vmem:[#allocation5 + $0x60] sm:$0xff] %v650
    %667 = vst [vmem:[#allocation5 + $0x70] sm:$0xff] %v651
    %668 = vst [vmem:[#allocation5 + $0x80] sm:$0xff] %v652
    %669 = vst [vmem:[#allocation5 + $0x90] sm:$0xff] %v653
    %670 = vst [vmem:[#allocation5 + $0xa0] sm:$0xff] %v654
    %671 = vst [vmem:[#allocation5 + $0xb0] sm:$0xff] %v655
    %672 = vst [vmem:[#allocation5 + $0xc0] sm:$0xff] %v656
    %673 = vst [vmem:[#allocation5 + $0xd0] sm:$0xff] %v657
    %674 = vst [vmem:[#allocation5 + $0xe0] sm:$0xff] %v658
    %675 = vst [vmem:[#allocation5 + $0xf0] sm:$0xff] %v659
    %v676 = vld [vmem:[%s61] sm:$0xff]
    %v677 = vld [vmem:[%s61 + $0x10] sm:$0xff]
    %v678 = vld [vmem:[%s61 + $0x20] sm:$0xff]
    %v679 = vld [vmem:[%s61 + $0x30] sm:$0xff]
    %v680 = vld [vmem:[%s61 + $0x40] sm:$0xff]
    %v681 = vld [vmem:[%s61 + $0x50] sm:$0xff]
    %v682 = vld [vmem:[%s61 + $0x60] sm:$0xff]
    %v683 = vld [vmem:[%s61 + $0x70] sm:$0xff]
    %v684 = vld [vmem:[%s61 + $0x80] sm:$0xff]
    %v685 = vld [vmem:[%s61 + $0x90] sm:$0xff]
    %v686 = vld [vmem:[%s61 + $0xa0] sm:$0xff]
    %v687 = vld [vmem:[%s61 + $0xb0] sm:$0xff]
    %v688 = vld [vmem:[%s61 + $0xc0] sm:$0xff]
    %v689 = vld [vmem:[%s61 + $0xd0] sm:$0xff]
    %v690 = vld [vmem:[%s61 + $0xe0] sm:$0xff]
    %v691 = vld [vmem:[%s61 + $0xf0] sm:$0xff]
    %v692 = vmul.f32 %v580, %v676
    %v693 = vmul.f32 %v584, %v677
    %v694 = vmul.f32 %v588, %v678
    %v695 = vmul.f32 %v592, %v679
    %v696 = vmul.f32 %v596, %v680
    %v697 = vmul.f32 %v600, %v681
    %v698 = vmul.f32 %v604, %v682
    %v699 = vmul.f32 %v608, %v683
    %v700 = vmul.f32 %v615, %v684
    %v701 = vmul.f32 %v619, %v685
    %v702 = vmul.f32 %v623, %v686
    %v703 = vmul.f32 %v627, %v687
    %v704 = vmul.f32 %v631, %v688
    %v705 = vmul.f32 %v635, %v689
    %v706 = vmul.f32 %v639, %v690
    %v707 = vmul.f32 %v643, %v691
    %s708 = scalar_lea.vmem [#allocation5], 8
    %709 = vst [vmem:[%s708] sm:$0xff] %v692
    %710 = vst [vmem:[%s708 + $0x10] sm:$0xff] %v693
    %711 = vst [vmem:[%s708 + $0x20] sm:$0xff] %v694
    %712 = vst [vmem:[%s708 + $0x30] sm:$0xff] %v695
    %713 = vst [vmem:[%s708 + $0x40] sm:$0xff] %v696
    %714 = vst [vmem:[%s708 + $0x50] sm:$0xff] %v697
    %715 = vst [vmem:[%s708 + $0x60] sm:$0xff] %v698
    %716 = vst [vmem:[%s708 + $0x70] sm:$0xff] %v699
    %717 = vst [vmem:[%s708 + $0x80] sm:$0xff] %v700
    %718 = vst [vmem:[%s708 + $0x90] sm:$0xff] %v701
    %719 = vst [vmem:[%s708 + $0xa0] sm:$0xff] %v702
    %720 = vst [vmem:[%s708 + $0xb0] sm:$0xff] %v703
    %721 = vst [vmem:[%s708 + $0xc0] sm:$0xff] %v704
    %722 = vst [vmem:[%s708 + $0xd0] sm:$0xff] %v705
    %723 = vst [vmem:[%s708 + $0xe0] sm:$0xff] %v706
    %724 = vst [vmem:[%s708 + $0xf0] sm:$0xff] %v707
    // Predicated region
    $region18: #{tpu_custom_call.1} parent=1 // pred_check
      _
    $region19: #{tpu_custom_call.1} parent=1 // pred_check_branch
      %726 = sbr.rel (0) target = $region21
    $region20: #{tpu_custom_call.1} parent=1 // pred_region
      %s728 = ssub.s32 4096, 4096
      %729 = vsyncadd [#allocation4], %s728
      %s730 = sshll.u32 [#allocation5], 4
      %s731 = int_to_ptr.vmem [resolvable:$true] %s730
      %736 = dma.vmem_to_hbm [thread:$0]  %s731, 4096, %s3, [#allocation4], 256, 256, 16
    $region21: #{tpu_custom_call.1} parent=1 // pred_fallthru
      _
    // Predicated region
    $region22: #{tpu_custom_call.1} parent=1 // pred_check
      _
    $region23: #{tpu_custom_call.1} parent=1 // pred_check_branch
      %738 = sbr.rel (0) target = $region25
    $region24: #{tpu_custom_call.1} parent=1 // pred_region
      %739 = dma.done [#allocation4], 4096
    $region25: #{tpu_custom_call.1} parent=1 // pred_fallthru
      _
    %740 = vsyncpa [#allocation3], 1
    %741 = vsyncpa [#allocation4], 1

</llo_original>
